<compile_context>
chip_gen: v5e
topology: v5e:2x2
jax: 0.10.0
libtpu: 0.0.40
codegen_flags: <defaults>
</compile_context>

<pallas_src>
import functools

import jax
import jax.numpy as jnp
from jax.experimental import pallas as pl
from jax.experimental.pallas import tpu as pltpu

EPS = 1e-5
NEG_SLOPE = 0.2
LANE = 128
SUBLANE = 8
VMEM_BUDGET = 56 * 1024 * 1024   # stay well under v7x's 64 MiB physical VMEM per TC


# ---------------- small helpers ----------------

def _round_up(n, m):
    return ((n + m - 1) // m) * m


def _pad2d(a, rows, cols):
    r, c = a.shape
    return jnp.pad(a, ((0, rows - r), (0, cols - c)))


def _leaky_relu(y):
    return jnp.where(y > 0, y, NEG_SLOPE * y)


def _layernorm_padded(y, gamma, beta, true_d, mask):
    """PyTorch-style LayerNorm (biased var, eps inside rsqrt) over the last dim.
    Only the first `true_d` lanes are real.  Padded lanes of y / gamma / beta are
    exactly 0 (zero-padded weights & bias guarantee this), so sums over all lanes
    equal sums over the real lanes; only the divisor must use true_d."""
    if mask is None:                      # true_d == padded width
        mu = jnp.mean(y, axis=-1, keepdims=True)
        diff = y - mu
        var = jnp.mean(diff * diff, axis=-1, keepdims=True)
    else:
        inv_d = 1.0 / true_d
        mu = jnp.sum(y, axis=-1, keepdims=True) * inv_d
        diff = jnp.where(mask, y - mu, 0.0)
        var = jnp.sum(diff * diff, axis=-1, keepdims=True) * inv_d
    yn = (y - mu) * jax.lax.rsqrt(var + EPS)
    return yn * gamma + beta


# ---------------- fused Pallas kernel ----------------

def _make_fused_kernel(stage_meta, d_pads):
    """stage_meta: tuple of (true_d, has_res) per stage (static).
    d_pads: tuple of padded widths per stage (static)."""
    # which (true_d, d_pad) pairs actually need a lane mask
    mask_keys = tuple(sorted({(td, dp) for (td, _), dp in zip(stage_meta, d_pads)
                              if td != dp}))

    def kernel(*refs):
        x_ref = refs[0]
        o_ref = refs[-1]
        p = refs[1:-1]

        # hoist lane masks: build each distinct mask exactly once per invocation
        masks = {(td, dp): jax.lax.broadcasted_iota(jnp.int32, (1, dp), 1) < td
                 for (td, dp) in mask_keys}

        h = x_ref[...].astype(jnp.float32)
        idx = 0
        for (true_d, has_res), d_pad in zip(stage_meta, d_pads):
            mask = masks.get((true_d, d_pad))
            w, b, g, be = p[idx], p[idx + 1], p[idx + 2], p[idx + 3]
            idx += 4
            # Linear (bf16 operands, f32 accumulate) + LayerNorm + LeakyReLU
            y = jnp.dot(h.astype(jnp.bfloat16), w[...],
                        preferred_element_type=jnp.float32) + b[...]
            h = _leaky_relu(_layernorm_padded(y, g[...], be[...], true_d, mask))
            # Dropout(0.1): eval-mode identity.
            # TODO(synk): training-mode stochastic dropout not implemented.
            if has_res:
                w1, b1, g1, be1, w2, b2, g2, be2 = p[idx:idx + 8]
                idx += 8
                t = jnp.dot(h.astype(jnp.bfloat16), w1[...],
                            preferred_element_type=jnp.float32) + b1[...]
                t = _leaky_relu(_layernorm_padded(t, g1[...], be1[...], true_d, mask))
                t = jnp.dot(t.astype(jnp.bfloat16), w2[...],
                            preferred_element_type=jnp.float32) + b2[...]
                t = _layernorm_padded(t, g2[...], be2[...], true_d, mask)
                h = _leaky_relu(t + h)   # residual add + LeakyReLU, f32

        o_ref[...] = h.astype(o_ref.dtype)

    return kernel


# ---------------- parameter padding (lane-dense layout) ----------------

def _prepare_padded_params(params, in_features):
    """Zero-pad every feature dim to a multiple of 128 lanes.
    Weights -> bf16 (MXU operands); bias/gamma/beta stay f32.
    Returns (flat_param_list, stage_meta, padded_dims_per_stage, in_pad)."""
    flat, meta, d_pads = [], [], []
    in_pad = _round_up(in_features, LANE)
    prev_pad = in_pad
    for stage in params:
        w, b, g, be = stage["main"]
        true_d = w.shape[1]
        d_pad = _round_up(true_d, LANE)
        flat += [_pad2d(w, prev_pad, d_pad).astype(jnp.bfloat16),
                 _pad2d(b, 1, d_pad).astype(jnp.float32),
                 _pad2d(g, 1, d_pad).astype(jnp.float32),
                 _pad2d(be, 1, d_pad).astype(jnp.float32)]
        has_res = "res" in stage
        if has_res:
            w1, b1, g1, be1, w2, b2, g2, be2 = stage["res"]
            flat += [_pad2d(w1, d_pad, d_pad).astype(jnp.bfloat16),
                     _pad2d(b1, 1, d_pad).astype(jnp.float32),
                     _pad2d(g1, 1, d_pad).astype(jnp.float32),
                     _pad2d(be1, 1, d_pad).astype(jnp.float32),
                     _pad2d(w2, d_pad, d_pad).astype(jnp.bfloat16),
                     _pad2d(b2, 1, d_pad).astype(jnp.float32),
                     _pad2d(g2, 1, d_pad).astype(jnp.float32),
                     _pad2d(be2, 1, d_pad).astype(jnp.float32)]
        meta.append((true_d, has_res))
        d_pads.append(d_pad)
        prev_pad = d_pad
    return flat, tuple(meta), tuple(d_pads), in_pad


def _estimate_vmem_bytes(tile_b, in_pad, d_pads, param_bytes):
    """Rough per-core VMEM footprint for a given batch tile (static Python ints)."""
    max_d = max(d_pads + (in_pad,))
    act = tile_b * max_d * 4                       # one f32 activation tile
    return (param_bytes                            # resident weights / LN params
            + 2 * tile_b * in_pad * 4              # double-buffered input tile
            + 2 * tile_b * d_pads[-1] * 4          # double-buffered output tile
            + 6 * act)                             # live activation temporaries


# ---------------- wrapper ----------------

@functools.partial(jax.jit, static_argnames=("tile_b",))
def feature_extractor(x, params, tile_b=512):
    B, F = x.shape
    flat_params, meta, d_pads, in_pad = _prepare_padded_params(params, F)
    d_last_pad = d_pads[-1]
    d_last_true = meta[-1][0]
    param_bytes = sum(int(p.size) * p.dtype.itemsize for p in flat_params)

    # batch tiling: multiple of 8 sublanes; shrink if VMEM estimate exceeds budget
    tile_b_eff = _round_up(max(int(tile_b), SUBLANE), SUBLANE)
    tile_b_eff = min(tile_b_eff, _round_up(B, SUBLANE))
    while (tile_b_eff > SUBLANE and
           _estimate_vmem_bytes(tile_b_eff, in_pad, d_pads, param_bytes) > VMEM_BUDGET):
        tile_b_eff = max(SUBLANE, _round_up(tile_b_eff // 2, SUBLANE))
    b_pad = _round_up(B, tile_b_eff)
    nb = b_pad // tile_b_eff

    x_pad = jnp.pad(x.astype(jnp.float32), ((0, b_pad - B), (0, in_pad - F)))

    # advisory cost estimate
    flops, transcendentals = 0, 0
    prev = in_pad
    for (true_d, has_res), d_pad in zip(meta, d_pads):
        flops += 2 * b_pad * prev * d_pad
        transcendentals += b_pad
        if has_res:
            flops += 2 * (2 * b_pad * d_pad * d_pad)
            transcendentals += 2 * b_pad
        prev = d_pad
    bytes_accessed = (x_pad.size * 4 + b_pad * d_last_pad * 4 + param_bytes)
    cost = pl.CostEstimate(flops=flops, transcendentals=transcendentals,
                           bytes_accessed=bytes_accessed)

    vmem_limit = int(min(VMEM_BUDGET,
                         max(32 * 1024 * 1024,
                             1.25 * _estimate_vmem_bytes(tile_b_eff, in_pad,
                                                         d_pads, param_bytes))))

    in_specs = [pl.BlockSpec((tile_b_eff, in_pad), lambda i: (i, 0))]
    # weights / bias / LN params: full-array blocks, same block every grid step -> VMEM-resident
    in_specs += [pl.BlockSpec(p.shape, lambda i: (0, 0)) for p in flat_params]
    out_spec = pl.BlockSpec((tile_b_eff, d_last_pad), lambda i: (i, 0))

    out_padded = pl.pallas_call(
        _make_fused_kernel(meta, d_pads),
        out_shape=jax.ShapeDtypeStruct((b_pad, d_last_pad), jnp.float32),
        grid=(nb,),
        in_specs=in_specs,
        out_specs=out_spec,
        compiler_params=pltpu.CompilerParams(
            dimension_semantics=("parallel",),      # shards across v7x's 2 TCs
            vmem_limit_bytes=vmem_limit),
        cost_estimate=cost,
    )(x_pad, *flat_params)

    return out_padded[:B, :d_last_true]


# ---------------- parameter init (deterministic, synthetic) ----------------

def init_params(key, in_features, dims, use_residual=True):
    params = []
    cur = in_features
    for d in dims:
        key, k1, k2 = jax.random.split(key, 3)
        w = jax.random.normal(k1, (cur, d), jnp.float32) / jnp.sqrt(jnp.float32(cur))
        b = jax.random.normal(k2, (1, d), jnp.float32) * 0.01
        gamma = jnp.ones((1, d), jnp.float32)
        beta = jnp.zeros((1, d), jnp.float32)
        stage = {"main": (w, b, gamma, beta)}
        if use_residual:
            key, r1, r2, r3, r4 = jax.random.split(key, 5)
            w1 = jax.random.normal(r1, (d, d), jnp.float32) / jnp.sqrt(jnp.float32(d))
            b1 = jax.random.normal(r2, (1, d), jnp.float32) * 0.01
            w2 = jax.random.normal(r3, (d, d), jnp.float32) / jnp.sqrt(jnp.float32(d))
            b2 = jax.random.normal(r4, (1, d), jnp.float32) * 0.01
            stage["res"] = (w1, b1, jnp.ones((1, d), jnp.float32), jnp.zeros((1, d), jnp.float32),
                            w2, b2, jnp.ones((1, d), jnp.float32), jnp.zeros((1, d), jnp.float32))
        params.append(stage)
        cur = d
    return params


# ---------------- pure-JAX references ----------------

def _ln_ref(y, gamma, beta):
    mu = jnp.mean(y, axis=-1, keepdims=True)
    var = jnp.mean((y - mu) ** 2, axis=-1, keepdims=True)
    return (y - mu) * jax.lax.rsqrt(var + EPS) * gamma + beta


def feature_extractor_ref(x, params, matmul_dtype=jnp.float32):
    def mm(a, w):
        return jnp.dot(a.astype(matmul_dtype), w.astype(matmul_dtype),
                       preferred_element_type=jnp.float32)
    h = x.astype(jnp.float32)
    for stage in params:
        w, b, g, be = stage["main"]
        h = _leaky_relu(_ln_ref(mm(h, w) + b, g, be))
        if "res" in stage:
            w1, b1, g1, be1, w2, b2, g2, be2 = stage["res"]
            t = _leaky_relu(_ln_ref(mm(h, w1) + b1, g1, be1))
            t = _ln_ref(mm(t, w2) + b2, g2, be2)
            h = _leaky_relu(t + h)
    return h


# ---------------- demo / self-test ----------------

if __name__ == "__main__":
    key = jax.random.PRNGKey(0)
    kx, kp = jax.random.split(key)

    batch = 8
    in_features = 32
    dims = (64, 128)

    x = jax.random.normal(kx, (batch, in_features), jnp.float32)
    params = init_params(kp, in_features, dims, use_residual=True)

    out = jax.block_until_ready(feature_extractor(x, params))

    assert out.shape == (batch, dims[-1]), out.shape
    assert bool(jnp.all(jnp.isfinite(out)))

    # precision-matched reference (bf16 matmul operands, f32 everything else)
    ref_mixed = feature_extractor_ref(x, params, matmul_dtype=jnp.bfloat16)
    assert jnp.allclose(out, ref_mixed, atol=2e-2, rtol=2e-2), "mismatch vs bf16-matmul reference"

    # full-f32 reference (module semantics), loose tolerance for bf16 matmul operands
    ref_f32 = feature_extractor_ref(x, params, matmul_dtype=jnp.float32)
    assert jnp.allclose(out, ref_f32, atol=1e-1, rtol=1e-1), "mismatch vs f32 reference"

    print("KERNEL_OK")
</pallas_src>

<mosaic_0001>
module attributes {stable_mosaic.version = 11 : i64} {
  func.func @kernel(%arg0: i32, %arg1: memref<8x128xf32, #tpu.memory_space<vmem>>, %arg2: memref<128x128xbf16, #tpu.memory_space<vmem>>, %arg3: memref<1x128xf32, #tpu.memory_space<vmem>>, %arg4: memref<1x128xf32, #tpu.memory_space<vmem>>, %arg5: memref<1x128xf32, #tpu.memory_space<vmem>>, %arg6: memref<128x128xbf16, #tpu.memory_space<vmem>>, %arg7: memref<1x128xf32, #tpu.memory_space<vmem>>, %arg8: memref<1x128xf32, #tpu.memory_space<vmem>>, %arg9: memref<1x128xf32, #tpu.memory_space<vmem>>, %arg10: memref<128x128xbf16, #tpu.memory_space<vmem>>, %arg11: memref<1x128xf32, #tpu.memory_space<vmem>>, %arg12: memref<1x128xf32, #tpu.memory_space<vmem>>, %arg13: memref<1x128xf32, #tpu.memory_space<vmem>>, %arg14: memref<128x128xbf16, #tpu.memory_space<vmem>>, %arg15: memref<1x128xf32, #tpu.memory_space<vmem>>, %arg16: memref<1x128xf32, #tpu.memory_space<vmem>>, %arg17: memref<1x128xf32, #tpu.memory_space<vmem>>, %arg18: memref<128x128xbf16, #tpu.memory_space<vmem>>, %arg19: memref<1x128xf32, #tpu.memory_space<vmem>>, %arg20: memref<1x128xf32, #tpu.memory_space<vmem>>, %arg21: memref<1x128xf32, #tpu.memory_space<vmem>>, %arg22: memref<128x128xbf16, #tpu.memory_space<vmem>>, %arg23: memref<1x128xf32, #tpu.memory_space<vmem>>, %arg24: memref<1x128xf32, #tpu.memory_space<vmem>>, %arg25: memref<1x128xf32, #tpu.memory_space<vmem>>, %arg26: memref<8x128xf32, #tpu.memory_space<vmem>>) attributes {dimension_semantics = [#tpu.dimension_semantics<parallel>], iteration_bounds = array<i64: 1>, scalar_prefetch = 0 : i64, scratch_operands = 0 : i64, tpu.core_type = #tpu.core_type<tc>, window_params = [{transform_indices = @transform_0, window_bounds = array<i64: 8, 128>}, {pipeline_mode = #tpu.pipeline_mode<synchronous>, transform_indices = @transform_1, window_bounds = array<i64: 128, 128>}, {pipeline_mode = #tpu.pipeline_mode<synchronous>, transform_indices = @transform_2, window_bounds = array<i64: 1, 128>}, {pipeline_mode = #tpu.pipeline_mode<synchronous>, transform_indices = @transform_3, window_bounds = array<i64: 1, 128>}, {pipeline_mode = #tpu.pipeline_mode<synchronous>, transform_indices = @transform_4, window_bounds = array<i64: 1, 128>}, {pipeline_mode = #tpu.pipeline_mode<synchronous>, transform_indices = @transform_5, window_bounds = array<i64: 128, 128>}, {pipeline_mode = #tpu.pipeline_mode<synchronous>, transform_indices = @transform_6, window_bounds = array<i64: 1, 128>}, {pipeline_mode = #tpu.pipeline_mode<synchronous>, transform_indices = @transform_7, window_bounds = array<i64: 1, 128>}, {pipeline_mode = #tpu.pipeline_mode<synchronous>, transform_indices = @transform_8, window_bounds = array<i64: 1, 128>}, {pipeline_mode = #tpu.pipeline_mode<synchronous>, transform_indices = @transform_9, window_bounds = array<i64: 128, 128>}, {pipeline_mode = #tpu.pipeline_mode<synchronous>, transform_indices = @transform_10, window_bounds = array<i64: 1, 128>}, {pipeline_mode = #tpu.pipeline_mode<synchronous>, transform_indices = @transform_11, window_bounds = array<i64: 1, 128>}, {pipeline_mode = #tpu.pipeline_mode<synchronous>, transform_indices = @transform_12, window_bounds = array<i64: 1, 128>}, {pipeline_mode = #tpu.pipeline_mode<synchronous>, transform_indices = @transform_13, window_bounds = array<i64: 128, 128>}, {pipeline_mode = #tpu.pipeline_mode<synchronous>, transform_indices = @transform_14, window_bounds = array<i64: 1, 128>}, {pipeline_mode = #tpu.pipeline_mode<synchronous>, transform_indices = @transform_15, window_bounds = array<i64: 1, 128>}, {pipeline_mode = #tpu.pipeline_mode<synchronous>, transform_indices = @transform_16, window_bounds = array<i64: 1, 128>}, {pipeline_mode = #tpu.pipeline_mode<synchronous>, transform_indices = @transform_17, window_bounds = array<i64: 128, 128>}, {pipeline_mode = #tpu.pipeline_mode<synchronous>, transform_indices = @transform_18, window_bounds = array<i64: 1, 128>}, {pipeline_mode = #tpu.pipeline_mode<synchronous>, transform_indices = @transform_19, window_bounds = array<i64: 1, 128>}, {pipeline_mode = #tpu.pipeline_mode<synchronous>, transform_indices = @transform_20, window_bounds = array<i64: 1, 128>}, {pipeline_mode = #tpu.pipeline_mode<synchronous>, transform_indices = @transform_21, window_bounds = array<i64: 128, 128>}, {pipeline_mode = #tpu.pipeline_mode<synchronous>, transform_indices = @transform_22, window_bounds = array<i64: 1, 128>}, {pipeline_mode = #tpu.pipeline_mode<synchronous>, transform_indices = @transform_23, window_bounds = array<i64: 1, 128>}, {pipeline_mode = #tpu.pipeline_mode<synchronous>, transform_indices = @transform_24, window_bounds = array<i64: 1, 128>}, {transform_indices = @transform_25, window_bounds = array<i64: 8, 128>}]} {
    %0 = tpu.iota {dimensions = array<i32: 1>} : vector<1x128xi32>
    %c64_i32 = arith.constant 64 : i32
    %1 = vector.broadcast %c64_i32 : i32 to vector<1x128xi32>
    %2 = arith.cmpi slt, %0, %1 : vector<1x128xi32>
    %c0 = arith.constant 0 : index
    %c0_0 = arith.constant 0 : index
    %3 = vector.load %arg1[%c0, %c0_0] : memref<8x128xf32, #tpu.memory_space<vmem>>, vector<8x128xf32>
    %4 = arith.truncf %3 : vector<8x128xf32> to vector<8x128xbf16>
    %c0_1 = arith.constant 0 : index
    %c0_2 = arith.constant 0 : index
    %5 = vector.load %arg2[%c0_1, %c0_2] : memref<128x128xbf16, #tpu.memory_space<vmem>>, vector<128x128xbf16>
    %cst = arith.constant dense<0.000000e+00> : vector<8x128xf32>
    %6 = tpu.matmul %4, %5, %cst {dimension_numbers = #tpu.dot_dimension_numbers<[1], [0], [0], [1], [0, 0, 1, 1], [], []>} : vector<8x128xbf16>, vector<128x128xbf16>, vector<8x128xf32> -> vector<8x128xf32>
    %c0_3 = arith.constant 0 : index
    %c0_4 = arith.constant 0 : index
    %7 = vector.load %arg3[%c0_3, %c0_4] : memref<1x128xf32, #tpu.memory_space<vmem>>, vector<1x128xf32>
    %8 = vector.broadcast %7 : vector<1x128xf32> to vector<8x128xf32>
    %9 = arith.addf %6, %8 : vector<8x128xf32>
    %c0_5 = arith.constant 0 : index
    %c0_6 = arith.constant 0 : index
    %10 = vector.load %arg4[%c0_5, %c0_6] : memref<1x128xf32, #tpu.memory_space<vmem>>, vector<1x128xf32>
    %c0_7 = arith.constant 0 : index
    %c0_8 = arith.constant 0 : index
    %11 = vector.load %arg5[%c0_7, %c0_8] : memref<1x128xf32, #tpu.memory_space<vmem>>, vector<1x128xf32>
    %cst_9 = arith.constant dense<0.000000e+00> : vector<8xf32>
    %12 = vector.multi_reduction <add>, %9, %cst_9 [1] : vector<8x128xf32> to vector<8xf32>
    %13 = vector.shape_cast %12 : vector<8xf32> to vector<8x1xf32>
    %cst_10 = arith.constant 1.562500e-02 : f32
    %14 = vector.broadcast %cst_10 : f32 to vector<8x1xf32>
    %15 = arith.mulf %13, %14 : vector<8x1xf32>
    %16 = vector.broadcast %15 : vector<8x1xf32> to vector<8x128xf32>
    %17 = arith.subf %9, %16 : vector<8x128xf32>
    %cst_11 = arith.constant 0.000000e+00 : f32
    %18 = vector.shape_cast %2 : vector<1x128xi1> to vector<1x128xi1>
    %19 = vector.broadcast %18 : vector<1x128xi1> to vector<8x128xi1>
    %20 = vector.broadcast %cst_11 : f32 to vector<8x128xf32>
    %21 = arith.select %19, %17, %20 : vector<8x128xi1>, vector<8x128xf32>
    %22 = arith.mulf %21, %21 : vector<8x128xf32>
    %cst_12 = arith.constant dense<0.000000e+00> : vector<8xf32>
    %23 = vector.multi_reduction <add>, %22, %cst_12 [1] : vector<8x128xf32> to vector<8xf32>
    %24 = vector.shape_cast %23 : vector<8xf32> to vector<8x1xf32>
    %cst_13 = arith.constant 1.562500e-02 : f32
    %25 = vector.broadcast %cst_13 : f32 to vector<8x1xf32>
    %26 = arith.mulf %24, %25 : vector<8x1xf32>
    %27 = vector.broadcast %15 : vector<8x1xf32> to vector<8x128xf32>
    %28 = arith.subf %9, %27 : vector<8x128xf32>
    %cst_14 = arith.constant 9.99999974E-6 : f32
    %29 = vector.broadcast %cst_14 : f32 to vector<8x1xf32>
    %30 = arith.addf %26, %29 : vector<8x1xf32>
    %31 = math.rsqrt %30 : vector<8x1xf32>
    %32 = vector.broadcast %31 : vector<8x1xf32> to vector<8x128xf32>
    %33 = arith.mulf %28, %32 : vector<8x128xf32>
    %34 = vector.broadcast %10 : vector<1x128xf32> to vector<8x128xf32>
    %35 = arith.mulf %33, %34 : vector<8x128xf32>
    %36 = vector.broadcast %11 : vector<1x128xf32> to vector<8x128xf32>
    %37 = arith.addf %35, %36 : vector<8x128xf32>
    %cst_15 = arith.constant 0.000000e+00 : f32
    %38 = vector.broadcast %cst_15 : f32 to vector<8x128xf32>
    %39 = arith.cmpf ogt, %37, %38 : vector<8x128xf32>
    %cst_16 = arith.constant 2.000000e-01 : f32
    %40 = vector.broadcast %cst_16 : f32 to vector<8x128xf32>
    %41 = arith.mulf %40, %37 : vector<8x128xf32>
    %42 = arith.select %39, %37, %41 : vector<8x128xi1>, vector<8x128xf32>
    %43 = arith.truncf %42 : vector<8x128xf32> to vector<8x128xbf16>
    %c0_17 = arith.constant 0 : index
    %c0_18 = arith.constant 0 : index
    %44 = vector.load %arg6[%c0_17, %c0_18] : memref<128x128xbf16, #tpu.memory_space<vmem>>, vector<128x128xbf16>
    %cst_19 = arith.constant dense<0.000000e+00> : vector<8x128xf32>
    %45 = tpu.matmul %43, %44, %cst_19 {dimension_numbers = #tpu.dot_dimension_numbers<[1], [0], [0], [1], [0, 0, 1, 1], [], []>} : vector<8x128xbf16>, vector<128x128xbf16>, vector<8x128xf32> -> vector<8x128xf32>
    %c0_20 = arith.constant 0 : index
    %c0_21 = arith.constant 0 : index
    %46 = vector.load %arg7[%c0_20, %c0_21] : memref<1x128xf32, #tpu.memory_space<vmem>>, vector<1x128xf32>
    %47 = vector.broadcast %46 : vector<1x128xf32> to vector<8x128xf32>
    %48 = arith.addf %45, %47 : vector<8x128xf32>
    %c0_22 = arith.constant 0 : index
    %c0_23 = arith.constant 0 : index
    %49 = vector.load %arg8[%c0_22, %c0_23] : memref<1x128xf32, #tpu.memory_space<vmem>>, vector<1x128xf32>
    %c0_24 = arith.constant 0 : index
    %c0_25 = arith.constant 0 : index
    %50 = vector.load %arg9[%c0_24, %c0_25] : memref<1x128xf32, #tpu.memory_space<vmem>>, vector<1x128xf32>
    %cst_26 = arith.constant dense<0.000000e+00> : vector<8xf32>
    %51 = vector.multi_reduction <add>, %48, %cst_26 [1] : vector<8x128xf32> to vector<8xf32>
    %52 = vector.shape_cast %51 : vector<8xf32> to vector<8x1xf32>
    %cst_27 = arith.constant 1.562500e-02 : f32
    %53 = vector.broadcast %cst_27 : f32 to vector<8x1xf32>
    %54 = arith.mulf %52, %53 : vector<8x1xf32>
    %55 = vector.broadcast %54 : vector<8x1xf32> to vector<8x128xf32>
    %56 = arith.subf %48, %55 : vector<8x128xf32>
    %cst_28 = arith.constant 0.000000e+00 : f32
    %57 = vector.shape_cast %2 : vector<1x128xi1> to vector<1x128xi1>
    %58 = vector.broadcast %57 : vector<1x128xi1> to vector<8x128xi1>
    %59 = vector.broadcast %cst_28 : f32 to vector<8x128xf32>
    %60 = arith.select %58, %56, %59 : vector<8x128xi1>, vector<8x128xf32>
    %61 = arith.mulf %60, %60 : vector<8x128xf32>
    %cst_29 = arith.constant dense<0.000000e+00> : vector<8xf32>
    %62 = vector.multi_reduction <add>, %61, %cst_29 [1] : vector<8x128xf32> to vector<8xf32>
    %63 = vector.shape_cast %62 : vector<8xf32> to vector<8x1xf32>
    %cst_30 = arith.constant 1.562500e-02 : f32
    %64 = vector.broadcast %cst_30 : f32 to vector<8x1xf32>
    %65 = arith.mulf %63, %64 : vector<8x1xf32>
    %66 = vector.broadcast %54 : vector<8x1xf32> to vector<8x128xf32>
    %67 = arith.subf %48, %66 : vector<8x128xf32>
    %cst_31 = arith.constant 9.99999974E-6 : f32
    %68 = vector.broadcast %cst_31 : f32 to vector<8x1xf32>
    %69 = arith.addf %65, %68 : vector<8x1xf32>
    %70 = math.rsqrt %69 : vector<8x1xf32>
    %71 = vector.broadcast %70 : vector<8x1xf32> to vector<8x128xf32>
    %72 = arith.mulf %67, %71 : vector<8x128xf32>
    %73 = vector.broadcast %49 : vector<1x128xf32> to vector<8x128xf32>
    %74 = arith.mulf %72, %73 : vector<8x128xf32>
    %75 = vector.broadcast %50 : vector<1x128xf32> to vector<8x128xf32>
    %76 = arith.addf %74, %75 : vector<8x128xf32>
    %cst_32 = arith.constant 0.000000e+00 : f32
    %77 = vector.broadcast %cst_32 : f32 to vector<8x128xf32>
    %78 = arith.cmpf ogt, %76, %77 : vector<8x128xf32>
    %cst_33 = arith.constant 2.000000e-01 : f32
    %79 = vector.broadcast %cst_33 : f32 to vector<8x128xf32>
    %80 = arith.mulf %79, %76 : vector<8x128xf32>
    %81 = arith.select %78, %76, %80 : vector<8x128xi1>, vector<8x128xf32>
    %82 = arith.truncf %81 : vector<8x128xf32> to vector<8x128xbf16>
    %c0_34 = arith.constant 0 : index
    %c0_35 = arith.constant 0 : index
    %83 = vector.load %arg10[%c0_34, %c0_35] : memref<128x128xbf16, #tpu.memory_space<vmem>>, vector<128x128xbf16>
    %cst_36 = arith.constant dense<0.000000e+00> : vector<8x128xf32>
    %84 = tpu.matmul %82, %83, %cst_36 {dimension_numbers = #tpu.dot_dimension_numbers<[1], [0], [0], [1], [0, 0, 1, 1], [], []>} : vector<8x128xbf16>, vector<128x128xbf16>, vector<8x128xf32> -> vector<8x128xf32>
    %c0_37 = arith.constant 0 : index
    %c0_38 = arith.constant 0 : index
    %85 = vector.load %arg11[%c0_37, %c0_38] : memref<1x128xf32, #tpu.memory_space<vmem>>, vector<1x128xf32>
    %86 = vector.broadcast %85 : vector<1x128xf32> to vector<8x128xf32>
    %87 = arith.addf %84, %86 : vector<8x128xf32>
    %c0_39 = arith.constant 0 : index
    %c0_40 = arith.constant 0 : index
    %88 = vector.load %arg12[%c0_39, %c0_40] : memref<1x128xf32, #tpu.memory_space<vmem>>, vector<1x128xf32>
    %c0_41 = arith.constant 0 : index
    %c0_42 = arith.constant 0 : index
    %89 = vector.load %arg13[%c0_41, %c0_42] : memref<1x128xf32, #tpu.memory_space<vmem>>, vector<1x128xf32>
    %cst_43 = arith.constant dense<0.000000e+00> : vector<8xf32>
    %90 = vector.multi_reduction <add>, %87, %cst_43 [1] : vector<8x128xf32> to vector<8xf32>
    %91 = vector.shape_cast %90 : vector<8xf32> to vector<8x1xf32>
    %cst_44 = arith.constant 1.562500e-02 : f32
    %92 = vector.broadcast %cst_44 : f32 to vector<8x1xf32>
    %93 = arith.mulf %91, %92 : vector<8x1xf32>
    %94 = vector.broadcast %93 : vector<8x1xf32> to vector<8x128xf32>
    %95 = arith.subf %87, %94 : vector<8x128xf32>
    %cst_45 = arith.constant 0.000000e+00 : f32
    %96 = vector.shape_cast %2 : vector<1x128xi1> to vector<1x128xi1>
    %97 = vector.broadcast %96 : vector<1x128xi1> to vector<8x128xi1>
    %98 = vector.broadcast %cst_45 : f32 to vector<8x128xf32>
    %99 = arith.select %97, %95, %98 : vector<8x128xi1>, vector<8x128xf32>
    %100 = arith.mulf %99, %99 : vector<8x128xf32>
    %cst_46 = arith.constant dense<0.000000e+00> : vector<8xf32>
    %101 = vector.multi_reduction <add>, %100, %cst_46 [1] : vector<8x128xf32> to vector<8xf32>
    %102 = vector.shape_cast %101 : vector<8xf32> to vector<8x1xf32>
    %cst_47 = arith.constant 1.562500e-02 : f32
    %103 = vector.broadcast %cst_47 : f32 to vector<8x1xf32>
    %104 = arith.mulf %102, %103 : vector<8x1xf32>
    %105 = vector.broadcast %93 : vector<8x1xf32> to vector<8x128xf32>
    %106 = arith.subf %87, %105 : vector<8x128xf32>
    %cst_48 = arith.constant 9.99999974E-6 : f32
    %107 = vector.broadcast %cst_48 : f32 to vector<8x1xf32>
    %108 = arith.addf %104, %107 : vector<8x1xf32>
    %109 = math.rsqrt %108 : vector<8x1xf32>
    %110 = vector.broadcast %109 : vector<8x1xf32> to vector<8x128xf32>
    %111 = arith.mulf %106, %110 : vector<8x128xf32>
    %112 = vector.broadcast %88 : vector<1x128xf32> to vector<8x128xf32>
    %113 = arith.mulf %111, %112 : vector<8x128xf32>
    %114 = vector.broadcast %89 : vector<1x128xf32> to vector<8x128xf32>
    %115 = arith.addf %113, %114 : vector<8x128xf32>
    %116 = arith.addf %115, %42 : vector<8x128xf32>
    %cst_49 = arith.constant 0.000000e+00 : f32
    %117 = vector.broadcast %cst_49 : f32 to vector<8x128xf32>
    %118 = arith.cmpf ogt, %116, %117 : vector<8x128xf32>
    %cst_50 = arith.constant 2.000000e-01 : f32
    %119 = vector.broadcast %cst_50 : f32 to vector<8x128xf32>
    %120 = arith.mulf %119, %116 : vector<8x128xf32>
    %121 = arith.select %118, %116, %120 : vector<8x128xi1>, vector<8x128xf32>
    %122 = arith.truncf %121 : vector<8x128xf32> to vector<8x128xbf16>
    %c0_51 = arith.constant 0 : index
    %c0_52 = arith.constant 0 : index
    %123 = vector.load %arg14[%c0_51, %c0_52] : memref<128x128xbf16, #tpu.memory_space<vmem>>, vector<128x128xbf16>
    %cst_53 = arith.constant dense<0.000000e+00> : vector<8x128xf32>
    %124 = tpu.matmul %122, %123, %cst_53 {dimension_numbers = #tpu.dot_dimension_numbers<[1], [0], [0], [1], [0, 0, 1, 1], [], []>} : vector<8x128xbf16>, vector<128x128xbf16>, vector<8x128xf32> -> vector<8x128xf32>
    %c0_54 = arith.constant 0 : index
    %c0_55 = arith.constant 0 : index
    %125 = vector.load %arg15[%c0_54, %c0_55] : memref<1x128xf32, #tpu.memory_space<vmem>>, vector<1x128xf32>
    %126 = vector.broadcast %125 : vector<1x128xf32> to vector<8x128xf32>
    %127 = arith.addf %124, %126 : vector<8x128xf32>
    %c0_56 = arith.constant 0 : index
    %c0_57 = arith.constant 0 : index
    %128 = vector.load %arg16[%c0_56, %c0_57] : memref<1x128xf32, #tpu.memory_space<vmem>>, vector<1x128xf32>
    %c0_58 = arith.constant 0 : index
    %c0_59 = arith.constant 0 : index
    %129 = vector.load %arg17[%c0_58, %c0_59] : memref<1x128xf32, #tpu.memory_space<vmem>>, vector<1x128xf32>
    %cst_60 = arith.constant dense<0.000000e+00> : vector<8xf32>
    %130 = vector.multi_reduction <add>, %127, %cst_60 [1] : vector<8x128xf32> to vector<8xf32>
    %131 = vector.shape_cast %130 : vector<8xf32> to vector<8x1xf32>
    %cst_61 = arith.constant 1.280000e+02 : f32
    %132 = vector.broadcast %cst_61 : f32 to vector<8x1xf32>
    %133 = arith.divf %131, %132 : vector<8x1xf32>
    %134 = vector.broadcast %133 : vector<8x1xf32> to vector<8x128xf32>
    %135 = arith.subf %127, %134 : vector<8x128xf32>
    %136 = arith.mulf %135, %135 : vector<8x128xf32>
    %cst_62 = arith.constant dense<0.000000e+00> : vector<8xf32>
    %137 = vector.multi_reduction <add>, %136, %cst_62 [1] : vector<8x128xf32> to vector<8xf32>
    %138 = vector.shape_cast %137 : vector<8xf32> to vector<8x1xf32>
    %cst_63 = arith.constant 1.280000e+02 : f32
    %139 = vector.broadcast %cst_63 : f32 to vector<8x1xf32>
    %140 = arith.divf %138, %139 : vector<8x1xf32>
    %141 = vector.broadcast %133 : vector<8x1xf32> to vector<8x128xf32>
    %142 = arith.subf %127, %141 : vector<8x128xf32>
    %cst_64 = arith.constant 9.99999974E-6 : f32
    %143 = vector.broadcast %cst_64 : f32 to vector<8x1xf32>
    %144 = arith.addf %140, %143 : vector<8x1xf32>
    %145 = math.rsqrt %144 : vector<8x1xf32>
    %146 = vector.broadcast %145 : vector<8x1xf32> to vector<8x128xf32>
    %147 = arith.mulf %142, %146 : vector<8x128xf32>
    %148 = vector.broadcast %128 : vector<1x128xf32> to vector<8x128xf32>
    %149 = arith.mulf %147, %148 : vector<8x128xf32>
    %150 = vector.broadcast %129 : vector<1x128xf32> to vector<8x128xf32>
    %151 = arith.addf %149, %150 : vector<8x128xf32>
    %cst_65 = arith.constant 0.000000e+00 : f32
    %152 = vector.broadcast %cst_65 : f32 to vector<8x128xf32>
    %153 = arith.cmpf ogt, %151, %152 : vector<8x128xf32>
    %cst_66 = arith.constant 2.000000e-01 : f32
    %154 = vector.broadcast %cst_66 : f32 to vector<8x128xf32>
    %155 = arith.mulf %154, %151 : vector<8x128xf32>
    %156 = arith.select %153, %151, %155 : vector<8x128xi1>, vector<8x128xf32>
    %157 = arith.truncf %156 : vector<8x128xf32> to vector<8x128xbf16>
    %c0_67 = arith.constant 0 : index
    %c0_68 = arith.constant 0 : index
    %158 = vector.load %arg18[%c0_67, %c0_68] : memref<128x128xbf16, #tpu.memory_space<vmem>>, vector<128x128xbf16>
    %cst_69 = arith.constant dense<0.000000e+00> : vector<8x128xf32>
    %159 = tpu.matmul %157, %158, %cst_69 {dimension_numbers = #tpu.dot_dimension_numbers<[1], [0], [0], [1], [0, 0, 1, 1], [], []>} : vector<8x128xbf16>, vector<128x128xbf16>, vector<8x128xf32> -> vector<8x128xf32>
    %c0_70 = arith.constant 0 : index
    %c0_71 = arith.constant 0 : index
    %160 = vector.load %arg19[%c0_70, %c0_71] : memref<1x128xf32, #tpu.memory_space<vmem>>, vector<1x128xf32>
    %161 = vector.broadcast %160 : vector<1x128xf32> to vector<8x128xf32>
    %162 = arith.addf %159, %161 : vector<8x128xf32>
    %c0_72 = arith.constant 0 : index
    %c0_73 = arith.constant 0 : index
    %163 = vector.load %arg20[%c0_72, %c0_73] : memref<1x128xf32, #tpu.memory_space<vmem>>, vector<1x128xf32>
    %c0_74 = arith.constant 0 : index
    %c0_75 = arith.constant 0 : index
    %164 = vector.load %arg21[%c0_74, %c0_75] : memref<1x128xf32, #tpu.memory_space<vmem>>, vector<1x128xf32>
    %cst_76 = arith.constant dense<0.000000e+00> : vector<8xf32>
    %165 = vector.multi_reduction <add>, %162, %cst_76 [1] : vector<8x128xf32> to vector<8xf32>
    %166 = vector.shape_cast %165 : vector<8xf32> to vector<8x1xf32>
    %cst_77 = arith.constant 1.280000e+02 : f32
    %167 = vector.broadcast %cst_77 : f32 to vector<8x1xf32>
    %168 = arith.divf %166, %167 : vector<8x1xf32>
    %169 = vector.broadcast %168 : vector<8x1xf32> to vector<8x128xf32>
    %170 = arith.subf %162, %169 : vector<8x128xf32>
    %171 = arith.mulf %170, %170 : vector<8x128xf32>
    %cst_78 = arith.constant dense<0.000000e+00> : vector<8xf32>
    %172 = vector.multi_reduction <add>, %171, %cst_78 [1] : vector<8x128xf32> to vector<8xf32>
    %173 = vector.shape_cast %172 : vector<8xf32> to vector<8x1xf32>
    %cst_79 = arith.constant 1.280000e+02 : f32
    %174 = vector.broadcast %cst_79 : f32 to vector<8x1xf32>
    %175 = arith.divf %173, %174 : vector<8x1xf32>
    %176 = vector.broadcast %168 : vector<8x1xf32> to vector<8x128xf32>
    %177 = arith.subf %162, %176 : vector<8x128xf32>
    %cst_80 = arith.constant 9.99999974E-6 : f32
    %178 = vector.broadcast %cst_80 : f32 to vector<8x1xf32>
    %179 = arith.addf %175, %178 : vector<8x1xf32>
    %180 = math.rsqrt %179 : vector<8x1xf32>
    %181 = vector.broadcast %180 : vector<8x1xf32> to vector<8x128xf32>
    %182 = arith.mulf %177, %181 : vector<8x128xf32>
    %183 = vector.broadcast %163 : vector<1x128xf32> to vector<8x128xf32>
    %184 = arith.mulf %182, %183 : vector<8x128xf32>
    %185 = vector.broadcast %164 : vector<1x128xf32> to vector<8x128xf32>
    %186 = arith.addf %184, %185 : vector<8x128xf32>
    %cst_81 = arith.constant 0.000000e+00 : f32
    %187 = vector.broadcast %cst_81 : f32 to vector<8x128xf32>
    %188 = arith.cmpf ogt, %186, %187 : vector<8x128xf32>
    %cst_82 = arith.constant 2.000000e-01 : f32
    %189 = vector.broadcast %cst_82 : f32 to vector<8x128xf32>
    %190 = arith.mulf %189, %186 : vector<8x128xf32>
    %191 = arith.select %188, %186, %190 : vector<8x128xi1>, vector<8x128xf32>
    %192 = arith.truncf %191 : vector<8x128xf32> to vector<8x128xbf16>
    %c0_83 = arith.constant 0 : index
    %c0_84 = arith.constant 0 : index
    %193 = vector.load %arg22[%c0_83, %c0_84] : memref<128x128xbf16, #tpu.memory_space<vmem>>, vector<128x128xbf16>
    %cst_85 = arith.constant dense<0.000000e+00> : vector<8x128xf32>
    %194 = tpu.matmul %192, %193, %cst_85 {dimension_numbers = #tpu.dot_dimension_numbers<[1], [0], [0], [1], [0, 0, 1, 1], [], []>} : vector<8x128xbf16>, vector<128x128xbf16>, vector<8x128xf32> -> vector<8x128xf32>
    %c0_86 = arith.constant 0 : index
    %c0_87 = arith.constant 0 : index
    %195 = vector.load %arg23[%c0_86, %c0_87] : memref<1x128xf32, #tpu.memory_space<vmem>>, vector<1x128xf32>
    %196 = vector.broadcast %195 : vector<1x128xf32> to vector<8x128xf32>
    %197 = arith.addf %194, %196 : vector<8x128xf32>
    %c0_88 = arith.constant 0 : index
    %c0_89 = arith.constant 0 : index
    %198 = vector.load %arg24[%c0_88, %c0_89] : memref<1x128xf32, #tpu.memory_space<vmem>>, vector<1x128xf32>
    %c0_90 = arith.constant 0 : index
    %c0_91 = arith.constant 0 : index
    %199 = vector.load %arg25[%c0_90, %c0_91] : memref<1x128xf32, #tpu.memory_space<vmem>>, vector<1x128xf32>
    %cst_92 = arith.constant dense<0.000000e+00> : vector<8xf32>
    %200 = vector.multi_reduction <add>, %197, %cst_92 [1] : vector<8x128xf32> to vector<8xf32>
    %201 = vector.shape_cast %200 : vector<8xf32> to vector<8x1xf32>
    %cst_93 = arith.constant 1.280000e+02 : f32
    %202 = vector.broadcast %cst_93 : f32 to vector<8x1xf32>
    %203 = arith.divf %201, %202 : vector<8x1xf32>
    %204 = vector.broadcast %203 : vector<8x1xf32> to vector<8x128xf32>
    %205 = arith.subf %197, %204 : vector<8x128xf32>
    %206 = arith.mulf %205, %205 : vector<8x128xf32>
    %cst_94 = arith.constant dense<0.000000e+00> : vector<8xf32>
    %207 = vector.multi_reduction <add>, %206, %cst_94 [1] : vector<8x128xf32> to vector<8xf32>
    %208 = vector.shape_cast %207 : vector<8xf32> to vector<8x1xf32>
    %cst_95 = arith.constant 1.280000e+02 : f32
    %209 = vector.broadcast %cst_95 : f32 to vector<8x1xf32>
    %210 = arith.divf %208, %209 : vector<8x1xf32>
    %211 = vector.broadcast %203 : vector<8x1xf32> to vector<8x128xf32>
    %212 = arith.subf %197, %211 : vector<8x128xf32>
    %cst_96 = arith.constant 9.99999974E-6 : f32
    %213 = vector.broadcast %cst_96 : f32 to vector<8x1xf32>
    %214 = arith.addf %210, %213 : vector<8x1xf32>
    %215 = math.rsqrt %214 : vector<8x1xf32>
    %216 = vector.broadcast %215 : vector<8x1xf32> to vector<8x128xf32>
    %217 = arith.mulf %212, %216 : vector<8x128xf32>
    %218 = vector.broadcast %198 : vector<1x128xf32> to vector<8x128xf32>
    %219 = arith.mulf %217, %218 : vector<8x128xf32>
    %220 = vector.broadcast %199 : vector<1x128xf32> to vector<8x128xf32>
    %221 = arith.addf %219, %220 : vector<8x128xf32>
    %222 = arith.addf %221, %156 : vector<8x128xf32>
    %cst_97 = arith.constant 0.000000e+00 : f32
    %223 = vector.broadcast %cst_97 : f32 to vector<8x128xf32>
    %224 = arith.cmpf ogt, %222, %223 : vector<8x128xf32>
    %cst_98 = arith.constant 2.000000e-01 : f32
    %225 = vector.broadcast %cst_98 : f32 to vector<8x128xf32>
    %226 = arith.mulf %225, %222 : vector<8x128xf32>
    %227 = arith.select %224, %222, %226 : vector<8x128xi1>, vector<8x128xf32>
    %c0_99 = arith.constant 0 : index
    %c0_100 = arith.constant 0 : index
    %228 = vector.load %arg26[%c0_99, %c0_100] : memref<8x128xf32, #tpu.memory_space<vmem>>, vector<8x128xf32>
    tpu.vector_store %arg26[%c0_99, %c0_100], %227 {strides = array<i32>} : memref<8x128xf32, #tpu.memory_space<vmem>>, vector<8x128xf32>,
    return
  }
  func.func @transform_0(%arg0: i32) -> (i32, i32) {
    %c0_i32 = arith.constant 0 : i32
    %c0_i32_0 = arith.constant 0 : i32
    return %arg0, %c0_i32 : i32, i32
  }
  func.func @transform_1(%arg0: i32) -> (i32, i32) {
    %c0_i32 = arith.constant 0 : i32
    %c0_i32_0 = arith.constant 0 : i32
    %c0_i32_1 = arith.constant 0 : i32
    return %c0_i32, %c0_i32_0 : i32, i32
  }
  func.func @transform_2(%arg0: i32) -> (i32, i32) {
    %c0_i32 = arith.constant 0 : i32
    %c0_i32_0 = arith.constant 0 : i32
    %c0_i32_1 = arith.constant 0 : i32
    return %c0_i32, %c0_i32_0 : i32, i32
  }
  func.func @transform_3(%arg0: i32) -> (i32, i32) {
    %c0_i32 = arith.constant 0 : i32
    %c0_i32_0 = arith.constant 0 : i32
    %c0_i32_1 = arith.constant 0 : i32
    return %c0_i32, %c0_i32_0 : i32, i32
  }
  func.func @transform_4(%arg0: i32) -> (i32, i32) {
    %c0_i32 = arith.constant 0 : i32
    %c0_i32_0 = arith.constant 0 : i32
    %c0_i32_1 = arith.constant 0 : i32
    return %c0_i32, %c0_i32_0 : i32, i32
  }
  func.func @transform_5(%arg0: i32) -> (i32, i32) {
    %c0_i32 = arith.constant 0 : i32
    %c0_i32_0 = arith.constant 0 : i32
    %c0_i32_1 = arith.constant 0 : i32
    return %c0_i32, %c0_i32_0 : i32, i32
  }
  func.func @transform_6(%arg0: i32) -> (i32, i32) {
    %c0_i32 = arith.constant 0 : i32
    %c0_i32_0 = arith.constant 0 : i32
    %c0_i32_1 = arith.constant 0 : i32
    return %c0_i32, %c0_i32_0 : i32, i32
  }
  func.func @transform_7(%arg0: i32) -> (i32, i32) {
    %c0_i32 = arith.constant 0 : i32
    %c0_i32_0 = arith.constant 0 : i32
    %c0_i32_1 = arith.constant 0 : i32
    return %c0_i32, %c0_i32_0 : i32, i32
  }
  func.func @transform_8(%arg0: i32) -> (i32, i32) {
    %c0_i32 = arith.constant 0 : i32
    %c0_i32_0 = arith.constant 0 : i32
    %c0_i32_1 = arith.constant 0 : i32
    return %c0_i32, %c0_i32_0 : i32, i32
  }
  func.func @transform_9(%arg0: i32) -> (i32, i32) {
    %c0_i32 = arith.constant 0 : i32
    %c0_i32_0 = arith.constant 0 : i32
    %c0_i32_1 = arith.constant 0 : i32
    return %c0_i32, %c0_i32_0 : i32, i32
  }
  func.func @transform_10(%arg0: i32) -> (i32, i32) {
    %c0_i32 = arith.constant 0 : i32
    %c0_i32_0 = arith.constant 0 : i32
    %c0_i32_1 = arith.constant 0 : i32
    return %c0_i32, %c0_i32_0 : i32, i32
  }
  func.func @transform_11(%arg0: i32) -> (i32, i32) {
    %c0_i32 = arith.constant 0 : i32
    %c0_i32_0 = arith.constant 0 : i32
    %c0_i32_1 = arith.constant 0 : i32
    return %c0_i32, %c0_i32_0 : i32, i32
  }
  func.func @transform_12(%arg0: i32) -> (i32, i32) {
    %c0_i32 = arith.constant 0 : i32
    %c0_i32_0 = arith.constant 0 : i32
    %c0_i32_1 = arith.constant 0 : i32
    return %c0_i32, %c0_i32_0 : i32, i32
  }
  func.func @transform_13(%arg0: i32) -> (i32, i32) {
    %c0_i32 = arith.constant 0 : i32
    %c0_i32_0 = arith.constant 0 : i32
    %c0_i32_1 = arith.constant 0 : i32
    return %c0_i32, %c0_i32_0 : i32, i32
  }
  func.func @transform_14(%arg0: i32) -> (i32, i32) {
    %c0_i32 = arith.constant 0 : i32
    %c0_i32_0 = arith.constant 0 : i32
    %c0_i32_1 = arith.constant 0 : i32
    return %c0_i32, %c0_i32_0 : i32, i32
  }
  func.func @transform_15(%arg0: i32) -> (i32, i32) {
    %c0_i32 = arith.constant 0 : i32
    %c0_i32_0 = arith.constant 0 : i32
    %c0_i32_1 = arith.constant 0 : i32
    return %c0_i32, %c0_i32_0 : i32, i32
  }
  func.func @transform_16(%arg0: i32) -> (i32, i32) {
    %c0_i32 = arith.constant 0 : i32
    %c0_i32_0 = arith.constant 0 : i32
    %c0_i32_1 = arith.constant 0 : i32
    return %c0_i32, %c0_i32_0 : i32, i32
  }
  func.func @transform_17(%arg0: i32) -> (i32, i32) {
    %c0_i32 = arith.constant 0 : i32
    %c0_i32_0 = arith.constant 0 : i32
    %c0_i32_1 = arith.constant 0 : i32
    return %c0_i32, %c0_i32_0 : i32, i32
  }
  func.func @transform_18(%arg0: i32) -> (i32, i32) {
    %c0_i32 = arith.constant 0 : i32
    %c0_i32_0 = arith.constant 0 : i32
    %c0_i32_1 = arith.constant 0 : i32
    return %c0_i32, %c0_i32_0 : i32, i32
  }
  func.func @transform_19(%arg0: i32) -> (i32, i32) {
    %c0_i32 = arith.constant 0 : i32
    %c0_i32_0 = arith.constant 0 : i32
    %c0_i32_1 = arith.constant 0 : i32
    return %c0_i32, %c0_i32_0 : i32, i32
  }
  func.func @transform_20(%arg0: i32) -> (i32, i32) {
    %c0_i32 = arith.constant 0 : i32
    %c0_i32_0 = arith.constant 0 : i32
    %c0_i32_1 = arith.constant 0 : i32
    return %c0_i32, %c0_i32_0 : i32, i32
  }
  func.func @transform_21(%arg0: i32) -> (i32, i32) {
    %c0_i32 = arith.constant 0 : i32
    %c0_i32_0 = arith.constant 0 : i32
    %c0_i32_1 = arith.constant 0 : i32
    return %c0_i32, %c0_i32_0 : i32, i32
  }
  func.func @transform_22(%arg0: i32) -> (i32, i32) {
    %c0_i32 = arith.constant 0 : i32
    %c0_i32_0 = arith.constant 0 : i32
    %c0_i32_1 = arith.constant 0 : i32
    return %c0_i32, %c0_i32_0 : i32, i32
  }
  func.func @transform_23(%arg0: i32) -> (i32, i32) {
    %c0_i32 = arith.constant 0 : i32
    %c0_i32_0 = arith.constant 0 : i32
    %c0_i32_1 = arith.constant 0 : i32
    return %c0_i32, %c0_i32_0 : i32, i32
  }
  func.func @transform_24(%arg0: i32) -> (i32, i32) {
    %c0_i32 = arith.constant 0 : i32
    %c0_i32_0 = arith.constant 0 : i32
    %c0_i32_1 = arith.constant 0 : i32
    return %c0_i32, %c0_i32_0 : i32, i32
  }
  func.func @transform_25(%arg0: i32) -> (i32, i32) {
    %c0_i32 = arith.constant 0 : i32
    %c0_i32_0 = arith.constant 0 : i32
    return %arg0, %c0_i32 : i32, i32
  }
}

</mosaic_0001>

<llo_original>
// kernel: feature_extractor.1
$region0: #{feature_extractor.1}
  #allocation0 [shape = 'u32[]', space=smem, size = 0x4, offset = 0x4, fixed_abs, tag = 'smem constant byte address 0x4 - core index']
  #allocation1 [shape = 'u32[72,128]{1,0:T(1,128)}', space=vmem, size = 0x9000, scoped, tag = 'internal scratch']
  %s0 = inlined_call_operand.vmem [shape: f32[8,128], index: 0, kind: input, shape index: {}]
  %s1 = inlined_call_operand.vmem [shape: bf16[128,128], index: 1, kind: input, shape index: {}]
  %s2 = inlined_call_operand.vmem [shape: f32[1,128], index: 2, kind: input, shape index: {}]
  %s3 = inlined_call_operand.vmem [shape: f32[1,128], index: 3, kind: input, shape index: {}]
  %s4 = inlined_call_operand.vmem [shape: f32[1,128], index: 4, kind: input, shape index: {}]
  %s5 = inlined_call_operand.vmem [shape: bf16[128,128], index: 5, kind: input, shape index: {}]
  %s6 = inlined_call_operand.vmem [shape: f32[1,128], index: 6, kind: input, shape index: {}]
  %s7 = inlined_call_operand.vmem [shape: f32[1,128], index: 7, kind: input, shape index: {}]
  %s8 = inlined_call_operand.vmem [shape: f32[1,128], index: 8, kind: input, shape index: {}]
  %s9 = inlined_call_operand.vmem [shape: bf16[128,128], index: 9, kind: input, shape index: {}]
  %s10 = inlined_call_operand.vmem [shape: f32[1,128], index: 10, kind: input, shape index: {}]
  %s11 = inlined_call_operand.vmem [shape: f32[1,128], index: 11, kind: input, shape index: {}]
  %s12 = inlined_call_operand.vmem [shape: f32[1,128], index: 12, kind: input, shape index: {}]
  %s13 = inlined_call_operand.vmem [shape: bf16[128,128], index: 13, kind: input, shape index: {}]
  %s14 = inlined_call_operand.vmem [shape: f32[1,128], index: 14, kind: input, shape index: {}]
  %s15 = inlined_call_operand.vmem [shape: f32[1,128], index: 15, kind: input, shape index: {}]
  %s16 = inlined_call_operand.vmem [shape: f32[1,128], index: 16, kind: input, shape index: {}]
  %s17 = inlined_call_operand.vmem [shape: bf16[128,128], index: 17, kind: input, shape index: {}]
  %s18 = inlined_call_operand.vmem [shape: f32[1,128], index: 18, kind: input, shape index: {}]
  %s19 = inlined_call_operand.vmem [shape: f32[1,128], index: 19, kind: input, shape index: {}]
  %s20 = inlined_call_operand.vmem [shape: f32[1,128], index: 20, kind: input, shape index: {}]
  %s21 = inlined_call_operand.vmem [shape: bf16[128,128], index: 21, kind: input, shape index: {}]
  %s22 = inlined_call_operand.vmem [shape: f32[1,128], index: 22, kind: input, shape index: {}]
  %s23 = inlined_call_operand.vmem [shape: f32[1,128], index: 23, kind: input, shape index: {}]
  %s24 = inlined_call_operand.vmem [shape: f32[1,128], index: 24, kind: input, shape index: {}]
  %s25 = inlined_call_operand.hbm [shape: f32[8,128], index: 25, kind: output, shape index: {}]
  %s26 = sld [smem:[#allocation0]]
  $region110: #{feature_extractor.1} parent=0
    _
  %s28 = ssub.s32 1, %s26
  %s29 = scalar_select 0, %s28, %s26
  $region1: #{feature_extractor.1} parent=0
    #allocation2 [shape = 'u8[4096]{0}', space=vmem, size = 0x1000, scoped, tag = 'output window, operand 0, single buffered']
    #allocation3 [shape = 's32[1]{0}', space=sflag, size = 0x4, scoped, tag = 'scoped memory for feature_extractor.1']
    %30 = vsyncpa [#allocation3], 0
    // Predicated region
    $region2: #{feature_extractor.1} parent=1 // pred_check
      _
    $region3: #{feature_extractor.1} parent=1 // pred_check_branch
      %32 = sbr.rel (0) target = $region5
    $region4: #{feature_extractor.1} parent=1 // pred_region
      _
    $region5: #{feature_extractor.1} parent=1 // pred_fallthru
      _
    // Predicated region
    $region6: #{feature_extractor.1} parent=1 // pred_check
      _
    $region7: #{feature_extractor.1} parent=1 // pred_check_branch
      %34 = sbr.rel (0) target = $region9
    $region8: #{feature_extractor.1} parent=1 // pred_region
      _
    $region9: #{feature_extractor.1} parent=1 // pred_fallthru
      _
    // Predicated region
    $region10: #{feature_extractor.1} parent=1 // pred_check
      _
    $region11: #{feature_extractor.1} parent=1 // pred_check_branch
      %36 = sbr.rel (0) target = $region13
    $region12: #{feature_extractor.1} parent=1 // pred_region
      _
    $region13: #{feature_extractor.1} parent=1 // pred_fallthru
      _
    // Predicated region
    $region14: #{feature_extractor.1} parent=1 // pred_check
      _
    $region15: #{feature_extractor.1} parent=1 // pred_check_branch
      %38 = sbr.rel (0) target = $region17
    $region16: #{feature_extractor.1} parent=1 // pred_region
      _
    $region17: #{feature_extractor.1} parent=1 // pred_fallthru
      _
    // Predicated region
    $region18: #{feature_extractor.1} parent=1 // pred_check
      _
    $region19: #{feature_extractor.1} parent=1 // pred_check_branch
      %40 = sbr.rel (0) target = $region21
    $region20: #{feature_extractor.1} parent=1 // pred_region
      _
    $region21: #{feature_extractor.1} parent=1 // pred_fallthru
      _
    // Predicated region
    $region22: #{feature_extractor.1} parent=1 // pred_check
      _
    $region23: #{feature_extractor.1} parent=1 // pred_check_branch
      %42 = sbr.rel (0) target = $region25
    $region24: #{feature_extractor.1} parent=1 // pred_region
      _
    $region25: #{feature_extractor.1} parent=1 // pred_fallthru
      _
    // Predicated region
    $region26: #{feature_extractor.1} parent=1 // pred_check
      _
    $region27: #{feature_extractor.1} parent=1 // pred_check_branch
      %44 = sbr.rel (0) target = $region29
    $region28: #{feature_extractor.1} parent=1 // pred_region
      _
    $region29: #{feature_extractor.1} parent=1 // pred_fallthru
      _
    // Predicated region
    $region30: #{feature_extractor.1} parent=1 // pred_check
      _
    $region31: #{feature_extractor.1} parent=1 // pred_check_branch
      %46 = sbr.rel (0) target = $region33
    $region32: #{feature_extractor.1} parent=1 // pred_region
      _
    $region33: #{feature_extractor.1} parent=1 // pred_fallthru
      _
    // Predicated region
    $region34: #{feature_extractor.1} parent=1 // pred_check
      _
    $region35: #{feature_extractor.1} parent=1 // pred_check_branch
      %48 = sbr.rel (0) target = $region37
    $region36: #{feature_extractor.1} parent=1 // pred_region
      _
    $region37: #{feature_extractor.1} parent=1 // pred_fallthru
      _
    // Predicated region
    $region38: #{feature_extractor.1} parent=1 // pred_check
      _
    $region39: #{feature_extractor.1} parent=1 // pred_check_branch
      %50 = sbr.rel (0) target = $region41
    $region40: #{feature_extractor.1} parent=1 // pred_region
      _
    $region41: #{feature_extractor.1} parent=1 // pred_fallthru
      _
    // Predicated region
    $region42: #{feature_extractor.1} parent=1 // pred_check
      _
    $region43: #{feature_extractor.1} parent=1 // pred_check_branch
      %52 = sbr.rel (0) target = $region45
    $region44: #{feature_extractor.1} parent=1 // pred_region
      _
    $region45: #{feature_extractor.1} parent=1 // pred_fallthru
      _
    // Predicated region
    $region46: #{feature_extractor.1} parent=1 // pred_check
      _
    $region47: #{feature_extractor.1} parent=1 // pred_check_branch
      %54 = sbr.rel (0) target = $region49
    $region48: #{feature_extractor.1} parent=1 // pred_region
      _
    $region49: #{feature_extractor.1} parent=1 // pred_fallthru
      _
    // Predicated region
    $region50: #{feature_extractor.1} parent=1 // pred_check
      _
    $region51: #{feature_extractor.1} parent=1 // pred_check_branch
      %56 = sbr.rel (0) target = $region53
    $region52: #{feature_extractor.1} parent=1 // pred_region
      _
    $region53: #{feature_extractor.1} parent=1 // pred_fallthru
      _
    // Predicated region
    $region54: #{feature_extractor.1} parent=1 // pred_check
      _
    $region55: #{feature_extractor.1} parent=1 // pred_check_branch
      %58 = sbr.rel (0) target = $region57
    $region56: #{feature_extractor.1} parent=1 // pred_region
      _
    $region57: #{feature_extractor.1} parent=1 // pred_fallthru
      _
    // Predicated region
    $region58: #{feature_extractor.1} parent=1 // pred_check
      _
    $region59: #{feature_extractor.1} parent=1 // pred_check_branch
      %60 = sbr.rel (0) target = $region61
    $region60: #{feature_extractor.1} parent=1 // pred_region
      _
    $region61: #{feature_extractor.1} parent=1 // pred_fallthru
      _
    // Predicated region
    $region62: #{feature_extractor.1} parent=1 // pred_check
      _
    $region63: #{feature_extractor.1} parent=1 // pred_check_branch
      %62 = sbr.rel (0) target = $region65
    $region64: #{feature_extractor.1} parent=1 // pred_region
      _
    $region65: #{feature_extractor.1} parent=1 // pred_fallthru
      _
    // Predicated region
    $region66: #{feature_extractor.1} parent=1 // pred_check
      _
    $region67: #{feature_extractor.1} parent=1 // pred_check_branch
      %64 = sbr.rel (0) target = $region69
    $region68: #{feature_extractor.1} parent=1 // pred_region
      _
    $region69: #{feature_extractor.1} parent=1 // pred_fallthru
      _
    // Predicated region
    $region70: #{feature_extractor.1} parent=1 // pred_check
      _
    $region71: #{feature_extractor.1} parent=1 // pred_check_branch
      %66 = sbr.rel (0) target = $region73
    $region72: #{feature_extractor.1} parent=1 // pred_region
      _
    $region73: #{feature_extractor.1} parent=1 // pred_fallthru
      _
    // Predicated region
    $region74: #{feature_extractor.1} parent=1 // pred_check
      _
    $region75: #{feature_extractor.1} parent=1 // pred_check_branch
      %68 = sbr.rel (0) target = $region77
    $region76: #{feature_extractor.1} parent=1 // pred_region
      _
    $region77: #{feature_extractor.1} parent=1 // pred_fallthru
      _
    // Predicated region
    $region78: #{feature_extractor.1} parent=1 // pred_check
      _
    $region79: #{feature_extractor.1} parent=1 // pred_check_branch
      %70 = sbr.rel (0) target = $region81
    $region80: #{feature_extractor.1} parent=1 // pred_region
      _
    $region81: #{feature_extractor.1} parent=1 // pred_fallthru
      _
    // Predicated region
    $region82: #{feature_extractor.1} parent=1 // pred_check
      _
    $region83: #{feature_extractor.1} parent=1 // pred_check_branch
      %72 = sbr.rel (0) target = $region85
    $region84: #{feature_extractor.1} parent=1 // pred_region
      _
    $region85: #{feature_extractor.1} parent=1 // pred_fallthru
      _
    // Predicated region
    $region86: #{feature_extractor.1} parent=1 // pred_check
      _
    $region87: #{feature_extractor.1} parent=1 // pred_check_branch
      %74 = sbr.rel (0) target = $region89
    $region88: #{feature_extractor.1} parent=1 // pred_region
      _
    $region89: #{feature_extractor.1} parent=1 // pred_fallthru
      _
    // Predicated region
    $region90: #{feature_extractor.1} parent=1 // pred_check
      _
    $region91: #{feature_extractor.1} parent=1 // pred_check_branch
      %76 = sbr.rel (0) target = $region93
    $region92: #{feature_extractor.1} parent=1 // pred_region
      _
    $region93: #{feature_extractor.1} parent=1 // pred_fallthru
      _
    // Predicated region
    $region94: #{feature_extractor.1} parent=1 // pred_check
      _
    $region95: #{feature_extractor.1} parent=1 // pred_check_branch
      %78 = sbr.rel (0) target = $region97
    $region96: #{feature_extractor.1} parent=1 // pred_region
      _
    $region97: #{feature_extractor.1} parent=1 // pred_fallthru
      _
    // Predicated region
    $region98: #{feature_extractor.1} parent=1 // pred_check
      _
    $region99: #{feature_extractor.1} parent=1 // pred_check_branch
      %80 = sbr.rel (0) target = $region101
    $region100: #{feature_extractor.1} parent=1 // pred_region
      _
    $region101: #{feature_extractor.1} parent=1 // pred_fallthru
      _
    %v81 = vlaneseq
    %v82 = vand.u32 %v81, 127
    %vm83 = vcmp.lt.s32.totalorder %v82, 64
    %v84 = vld [vmem:[%s0] sm:$0xff]
    %v85 = vpack.c.bf16 %v84, %v84
    %v86 = vld [vmem:[%s1] sm:$0xf]
    %v87 = vld [vmem:[%s1 + $0x4] sm:$0xf]
    %v88 = vld [vmem:[%s1 + $0x8] sm:$0xf]
    %v89 = vld [vmem:[%s1 + $0xc] sm:$0xf]
    %v90 = vld [vmem:[%s1 + $0x10] sm:$0xf]
    %v91 = vld [vmem:[%s1 + $0x14] sm:$0xf]
    %v92 = vld [vmem:[%s1 + $0x18] sm:$0xf]
    %v93 = vld [vmem:[%s1 + $0x1c] sm:$0xf]
    %v94 = vld [vmem:[%s1 + $0x20] sm:$0xf]
    %v95 = vld [vmem:[%s1 + $0x24] sm:$0xf]
    %v96 = vld [vmem:[%s1 + $0x28] sm:$0xf]
    %v97 = vld [vmem:[%s1 + $0x2c] sm:$0xf]
    %v98 = vld [vmem:[%s1 + $0x30] sm:$0xf]
    %v99 = vld [vmem:[%s1 + $0x34] sm:$0xf]
    %v100 = vld [vmem:[%s1 + $0x38] sm:$0xf]
    %v101 = vld [vmem:[%s1 + $0x3c] sm:$0xf]
    %v102 = vld [vmem:[%s2] sm:$0x1]
    %v104 = vperm.slane %v102, 0
    %v122 = vunpack.c.l.b16 %v86
    %v123 = vunpack.c.l.b16 %v87
    %v124 = vunpack.c.l.b16 %v88
    %v125 = vunpack.c.l.b16 %v89
    %v126 = vunpack.c.l.b16 %v90
    %v127 = vunpack.c.l.b16 %v91
    %v128 = vunpack.c.l.b16 %v92
    %v129 = vunpack.c.l.b16 %v93
    %v130 = vunpack.c.l.b16 %v94
    %v131 = vunpack.c.l.b16 %v95
    %v132 = vunpack.c.l.b16 %v96
    %v133 = vunpack.c.l.b16 %v97
    %v134 = vunpack.c.l.b16 %v98
    %v135 = vunpack.c.l.b16 %v99
    %v136 = vunpack.c.l.b16 %v100
    %v137 = vunpack.c.l.b16 %v101
    %v138 = vpack.c.b16 %v123, %v122
    %v139 = vpack.c.b16 %v125, %v124
    %v140 = vpack.c.b16 %v127, %v126
    %v141 = vpack.c.b16 %v129, %v128
    %v142 = vpack.c.b16 %v131, %v130
    %v143 = vpack.c.b16 %v133, %v132
    %v144 = vpack.c.b16 %v135, %v134
    %v145 = vpack.c.b16 %v137, %v136
    %154 = vmatpush.bf16.msra.mxu0 %v145
    %155 = vmatpush.bf16.msra.mxu0 %v144
    %156 = vmatpush.bf16.msra.mxu0 %v143
    %157 = vmatpush.bf16.msra.mxu0 %v142
    %158 = vmatpush.bf16.msra.mxu0 %v141
    %159 = vmatpush.bf16.msra.mxu0 %v140
    %160 = vmatpush.bf16.msra.mxu0 %v139
    %161 = vmatpush.bf16.msra.mxu0 %v138
    %162 = vmatmul.bf16.gmra.mxu0 %v85
    %v163 = vpop.f32.mrf.mxu0
    %v164 = vadd.f32 %v104, %v163
    %v165 = vpop.f32.mrf.mxu0
    %166 = vdwg.mxu0
    %v167 = vld [vmem:[%s3] sm:$0x1]
    %v168 = vld [vmem:[%s4] sm:$0x1]
    %169 = vadd.xlane.f32.xlu0 %v164
    %v170 = vpop.xlane.xlu0 %169
    %v171 = vmul.f32 %v170, 0.015625
    %v172 = vsub.f32 %v164, %v171
    %v173 = vsel %vm83, 1, 0
    %vm174 = vcmp.eq.s32.totalorder %v173, 1
    %v175 = vsel %vm174, %v172, 0.0
    %v176 = vmul.f32 %v175, %v175
    %177 = vadd.xlane.f32.xlu0 %v176
    %v178 = vpop.xlane.xlu0 %177
    %v179 = vmul.f32 %v178, 0.015625
    %v180 = vadd.f32 %v179, 1e-05
    %v181 = vrsqrt.pop %v180
    %v182 = vmul.f32 %v181, %v180
    %v183 = vmul.f32 %v182, %v181
    %v184 = vmul.f32 0.5, %v183
    %v185 = vsub.f32 1.5, %v184
    %v186 = vmul.f32 %v181, %v185
    %vm187 = vweird.f32 %v180
    %vm188 = vweird.f32 %v181
    %vm189 = vmor %vm187, %vm188
    %v190 = vsel %vm189, %v181, %v186
    %v191 = vmul.f32 %v172, %v190
    %v193 = vperm.slane %v167, 0
    %v195 = vmul.f32 %v191, %v193
    %v197 = vperm.slane %v168, 0
    %v199 = vadd.f32 %v195, %v197
    %vm200 = vcmp.gt.f32.partialorder %v199, 0.0
    %v201 = vmul.f32 %v199, 0.2
    %v202 = vsel %vm200, %v199, %v201
    %v203 = vpack.c.bf16 %v202, %v202
    %v204 = vld [vmem:[%s5] sm:$0xf]
    %v205 = vld [vmem:[%s5 + $0x4] sm:$0xf]
    %v206 = vld [vmem:[%s5 + $0x8] sm:$0xf]
    %v207 = vld [vmem:[%s5 + $0xc] sm:$0xf]
    %v208 = vld [vmem:[%s5 + $0x10] sm:$0xf]
    %v209 = vld [vmem:[%s5 + $0x14] sm:$0xf]
    %v210 = vld [vmem:[%s5 + $0x18] sm:$0xf]
    %v211 = vld [vmem:[%s5 + $0x1c] sm:$0xf]
    %v212 = vld [vmem:[%s5 + $0x20] sm:$0xf]
    %v213 = vld [vmem:[%s5 + $0x24] sm:$0xf]
    %v214 = vld [vmem:[%s5 + $0x28] sm:$0xf]
    %v215 = vld [vmem:[%s5 + $0x2c] sm:$0xf]
    %v216 = vld [vmem:[%s5 + $0x30] sm:$0xf]
    %v217 = vld [vmem:[%s5 + $0x34] sm:$0xf]
    %v218 = vld [vmem:[%s5 + $0x38] sm:$0xf]
    %v219 = vld [vmem:[%s5 + $0x3c] sm:$0xf]
    %v220 = vld [vmem:[%s6] sm:$0x1]
    %v222 = vperm.slane %v220, 0
    %v240 = vunpack.c.l.b16 %v204
    %v241 = vunpack.c.l.b16 %v205
    %v242 = vunpack.c.l.b16 %v206
    %v243 = vunpack.c.l.b16 %v207
    %v244 = vunpack.c.l.b16 %v208
    %v245 = vunpack.c.l.b16 %v209
    %v246 = vunpack.c.l.b16 %v210
    %v247 = vunpack.c.l.b16 %v211
    %v248 = vunpack.c.l.b16 %v212
    %v249 = vunpack.c.l.b16 %v213
    %v250 = vunpack.c.l.b16 %v214
    %v251 = vunpack.c.l.b16 %v215
    %v252 = vunpack.c.l.b16 %v216
    %v253 = vunpack.c.l.b16 %v217
    %v254 = vunpack.c.l.b16 %v218
    %v255 = vunpack.c.l.b16 %v219
    %v256 = vpack.c.b16 %v241, %v240
    %v257 = vpack.c.b16 %v243, %v242
    %v258 = vpack.c.b16 %v245, %v244
    %v259 = vpack.c.b16 %v247, %v246
    %v260 = vpack.c.b16 %v249, %v248
    %v261 = vpack.c.b16 %v251, %v250
    %v262 = vpack.c.b16 %v253, %v252
    %v263 = vpack.c.b16 %v255, %v254
    %272 = vmatpush.bf16.msra.mxu0 %v263
    %273 = vmatpush.bf16.msra.mxu0 %v262
    %274 = vmatpush.bf16.msra.mxu0 %v261
    %275 = vmatpush.bf16.msra.mxu0 %v260
    %276 = vmatpush.bf16.msra.mxu0 %v259
    %277 = vmatpush.bf16.msra.mxu0 %v258
    %278 = vmatpush.bf16.msra.mxu0 %v257
    %279 = vmatpush.bf16.msra.mxu0 %v256
    %280 = vmatmul.bf16.gmra.mxu0 %v203
    %v281 = vpop.f32.mrf.mxu0
    %v282 = vadd.f32 %v222, %v281
    %v283 = vpop.f32.mrf.mxu0
    %284 = vdwg.mxu0
    %v285 = vld [vmem:[%s7] sm:$0x1]
    %v286 = vld [vmem:[%s8] sm:$0x1]
    %287 = vadd.xlane.f32.xlu0 %v282
    %v288 = vpop.xlane.xlu0 %287
    %v289 = vmul.f32 %v288, 0.015625
    %v290 = vsub.f32 %v282, %v289
    %v291 = vsel %vm174, %v290, 0.0
    %v292 = vmul.f32 %v291, %v291
    %293 = vadd.xlane.f32.xlu0 %v292
    %v294 = vpop.xlane.xlu0 %293
    %v295 = vmul.f32 %v294, 0.015625
    %v296 = vadd.f32 %v295, 1e-05
    %v297 = vrsqrt.pop %v296
    %v298 = vmul.f32 %v297, %v296
    %v299 = vmul.f32 %v298, %v297
    %v300 = vmul.f32 0.5, %v299
    %v301 = vsub.f32 1.5, %v300
    %v302 = vmul.f32 %v297, %v301
    %vm303 = vweird.f32 %v296
    %vm304 = vweird.f32 %v297
    %vm305 = vmor %vm303, %vm304
    %v306 = vsel %vm305, %v297, %v302
    %v307 = vmul.f32 %v290, %v306
    %v309 = vperm.slane %v285, 0
    %v311 = vmul.f32 %v307, %v309
    %v313 = vperm.slane %v286, 0
    %v315 = vadd.f32 %v311, %v313
    %vm316 = vcmp.gt.f32.partialorder %v315, 0.0
    %v317 = vmul.f32 %v315, 0.2
    %v318 = vsel %vm316, %v315, %v317
    %v319 = vpack.c.bf16 %v318, %v318
    %v320 = vld [vmem:[%s9] sm:$0xf]
    %v321 = vld [vmem:[%s9 + $0x4] sm:$0xf]
    %v322 = vld [vmem:[%s9 + $0x8] sm:$0xf]
    %v323 = vld [vmem:[%s9 + $0xc] sm:$0xf]
    %v324 = vld [vmem:[%s9 + $0x10] sm:$0xf]
    %v325 = vld [vmem:[%s9 + $0x14] sm:$0xf]
    %v326 = vld [vmem:[%s9 + $0x18] sm:$0xf]
    %v327 = vld [vmem:[%s9 + $0x1c] sm:$0xf]
    %v328 = vld [vmem:[%s9 + $0x20] sm:$0xf]
    %v329 = vld [vmem:[%s9 + $0x24] sm:$0xf]
    %v330 = vld [vmem:[%s9 + $0x28] sm:$0xf]
    %v331 = vld [vmem:[%s9 + $0x2c] sm:$0xf]
    %v332 = vld [vmem:[%s9 + $0x30] sm:$0xf]
    %v333 = vld [vmem:[%s9 + $0x34] sm:$0xf]
    %v334 = vld [vmem:[%s9 + $0x38] sm:$0xf]
    %v335 = vld [vmem:[%s9 + $0x3c] sm:$0xf]
    %v336 = vld [vmem:[%s10] sm:$0x1]
    %v338 = vperm.slane %v336, 0
    %v356 = vunpack.c.l.b16 %v320
    %v357 = vunpack.c.l.b16 %v321
    %v358 = vunpack.c.l.b16 %v322
    %v359 = vunpack.c.l.b16 %v323
    %v360 = vunpack.c.l.b16 %v324
    %v361 = vunpack.c.l.b16 %v325
    %v362 = vunpack.c.l.b16 %v326
    %v363 = vunpack.c.l.b16 %v327
    %v364 = vunpack.c.l.b16 %v328
    %v365 = vunpack.c.l.b16 %v329
    %v366 = vunpack.c.l.b16 %v330
    %v367 = vunpack.c.l.b16 %v331
    %v368 = vunpack.c.l.b16 %v332
    %v369 = vunpack.c.l.b16 %v333
    %v370 = vunpack.c.l.b16 %v334
    %v371 = vunpack.c.l.b16 %v335
    %v372 = vpack.c.b16 %v357, %v356
    %v373 = vpack.c.b16 %v359, %v358
    %v374 = vpack.c.b16 %v361, %v360
    %v375 = vpack.c.b16 %v363, %v362
    %v376 = vpack.c.b16 %v365, %v364
    %v377 = vpack.c.b16 %v367, %v366
    %v378 = vpack.c.b16 %v369, %v368
    %v379 = vpack.c.b16 %v371, %v370
    %388 = vmatpush.bf16.msra.mxu0 %v379
    %389 = vmatpush.bf16.msra.mxu0 %v378
    %390 = vmatpush.bf16.msra.mxu0 %v377
    %391 = vmatpush.bf16.msra.mxu0 %v376
    %392 = vmatpush.bf16.msra.mxu0 %v375
    %393 = vmatpush.bf16.msra.mxu0 %v374
    %394 = vmatpush.bf16.msra.mxu0 %v373
    %395 = vmatpush.bf16.msra.mxu0 %v372
    %396 = vmatmul.bf16.gmra.mxu0 %v319
    %v397 = vpop.f32.mrf.mxu0
    %v398 = vadd.f32 %v338, %v397
    %v399 = vpop.f32.mrf.mxu0
    %400 = vdwg.mxu0
    %v401 = vld [vmem:[%s11] sm:$0x1]
    %v402 = vld [vmem:[%s12] sm:$0x1]
    %403 = vadd.xlane.f32.xlu0 %v398
    %v404 = vpop.xlane.xlu0 %403
    %v405 = vmul.f32 %v404, 0.015625
    %v406 = vsub.f32 %v398, %v405
    %v407 = vsel %vm174, %v406, 0.0
    %v408 = vmul.f32 %v407, %v407
    %409 = vadd.xlane.f32.xlu0 %v408
    %v410 = vpop.xlane.xlu0 %409
    %v411 = vmul.f32 %v410, 0.015625
    %v412 = vadd.f32 %v411, 1e-05
    %v413 = vrsqrt.pop %v412
    %v414 = vmul.f32 %v413, %v412
    %v415 = vmul.f32 %v414, %v413
    %v416 = vmul.f32 0.5, %v415
    %v417 = vsub.f32 1.5, %v416
    %v418 = vmul.f32 %v413, %v417
    %vm419 = vweird.f32 %v412
    %vm420 = vweird.f32 %v413
    %vm421 = vmor %vm419, %vm420
    %v422 = vsel %vm421, %v413, %v418
    %v423 = vmul.f32 %v406, %v422
    %v425 = vperm.slane %v401, 0
    %v427 = vmul.f32 %v423, %v425
    %v429 = vperm.slane %v402, 0
    %v431 = vadd.f32 %v427, %v429
    %v432 = vadd.f32 %v431, %v202
    %vm433 = vcmp.gt.f32.partialorder %v432, 0.0
    %v434 = vmul.f32 %v432, 0.2
    %v435 = vsel %vm433, %v432, %v434
    %v436 = vpack.c.bf16 %v435, %v435
    %v437 = vld [vmem:[%s13] sm:$0xf]
    %v438 = vld [vmem:[%s13 + $0x4] sm:$0xf]
    %v439 = vld [vmem:[%s13 + $0x8] sm:$0xf]
    %v440 = vld [vmem:[%s13 + $0xc] sm:$0xf]
    %v441 = vld [vmem:[%s13 + $0x10] sm:$0xf]
    %v442 = vld [vmem:[%s13 + $0x14] sm:$0xf]
    %v443 = vld [vmem:[%s13 + $0x18] sm:$0xf]
    %v444 = vld [vmem:[%s13 + $0x1c] sm:$0xf]
    %v445 = vld [vmem:[%s13 + $0x20] sm:$0xf]
    %v446 = vld [vmem:[%s13 + $0x24] sm:$0xf]
    %v447 = vld [vmem:[%s13 + $0x28] sm:$0xf]
    %v448 = vld [vmem:[%s13 + $0x2c] sm:$0xf]
    %v449 = vld [vmem:[%s13 + $0x30] sm:$0xf]
    %v450 = vld [vmem:[%s13 + $0x34] sm:$0xf]
    %v451 = vld [vmem:[%s13 + $0x38] sm:$0xf]
    %v452 = vld [vmem:[%s13 + $0x3c] sm:$0xf]
    %v453 = vld [vmem:[%s14] sm:$0x1]
    %v455 = vperm.slane %v453, 0
    %v473 = vunpack.c.l.b16 %v437
    %v474 = vunpack.c.l.b16 %v438
    %v475 = vunpack.c.l.b16 %v439
    %v476 = vunpack.c.l.b16 %v440
    %v477 = vunpack.c.l.b16 %v441
    %v478 = vunpack.c.l.b16 %v442
    %v479 = vunpack.c.l.b16 %v443
    %v480 = vunpack.c.l.b16 %v444
    %v481 = vunpack.c.l.b16 %v445
    %v482 = vunpack.c.l.b16 %v446
    %v483 = vunpack.c.l.b16 %v447
    %v484 = vunpack.c.l.b16 %v448
    %v485 = vunpack.c.l.b16 %v449
    %v486 = vunpack.c.l.b16 %v450
    %v487 = vunpack.c.l.b16 %v451
    %v488 = vunpack.c.l.b16 %v452
    %v489 = vpack.c.b16 %v474, %v473
    %v490 = vpack.c.b16 %v476, %v475
    %v491 = vpack.c.b16 %v478, %v477
    %v492 = vpack.c.b16 %v480, %v479
    %v493 = vpack.c.b16 %v482, %v481
    %v494 = vpack.c.b16 %v484, %v483
    %v495 = vpack.c.b16 %v486, %v485
    %v496 = vpack.c.b16 %v488, %v487
    %505 = vmatpush.bf16.msra.mxu0 %v496
    %506 = vmatpush.bf16.msra.mxu0 %v495
    %507 = vmatpush.bf16.msra.mxu0 %v494
    %508 = vmatpush.bf16.msra.mxu0 %v493
    %509 = vmatpush.bf16.msra.mxu0 %v492
    %510 = vmatpush.bf16.msra.mxu0 %v491
    %511 = vmatpush.bf16.msra.mxu0 %v490
    %512 = vmatpush.bf16.msra.mxu0 %v489
    %513 = vmatmul.bf16.gmra.mxu0 %v436
    %v514 = vpop.f32.mrf.mxu0
    %v515 = vadd.f32 %v455, %v514
    %v516 = vpop.f32.mrf.mxu0
    %517 = vdwg.mxu0
    %v518 = vld [vmem:[%s15] sm:$0x1]
    %v519 = vld [vmem:[%s16] sm:$0x1]
    %520 = vadd.xlane.f32.xlu0 %v515
    %v521 = vpop.xlane.xlu0 %520
    %v522 = vrcp.pop 128.0
    %v523 = vmul.f32 128.0, %v522
    %v524 = vsub.f32 1.0, %v523
    %v525 = vmul.f32 %v522, %v524
    %v526 = vadd.f32 %v522, %v525
    %vm527 = vweird.f32 %v522
    %v528 = vsel %vm527, %v522, %v526
    %v529 = vmul.f32 %v521, %v528
    %v530 = vsub.f32 %v515, %v529
    %v531 = vmul.f32 %v530, %v530
    %532 = vadd.xlane.f32.xlu0 %v531
    %v533 = vpop.xlane.xlu0 %532
    %v534 = vmul.f32 %v533, %v528
    %v535 = vadd.f32 %v534, 1e-05
    %v536 = vrsqrt.pop %v535
    %v537 = vmul.f32 %v536, %v535
    %v538 = vmul.f32 %v537, %v536
    %v539 = vmul.f32 0.5, %v538
    %v540 = vsub.f32 1.5, %v539
    %v541 = vmul.f32 %v536, %v540
    %vm542 = vweird.f32 %v535
    %vm543 = vweird.f32 %v536
    %vm544 = vmor %vm542, %vm543
    %v545 = vsel %vm544, %v536, %v541
    %v546 = vmul.f32 %v530, %v545
    %v548 = vperm.slane %v518, 0
    %v550 = vmul.f32 %v546, %v548
    %v552 = vperm.slane %v519, 0
    %v554 = vadd.f32 %v550, %v552
    %vm555 = vcmp.gt.f32.partialorder %v554, 0.0
    %v556 = vmul.f32 %v554, 0.2
    %v557 = vsel %vm555, %v554, %v556
    %v558 = vpack.c.bf16 %v557, %v557
    %v559 = vld [vmem:[%s17] sm:$0xf]
    %v560 = vld [vmem:[%s17 + $0x4] sm:$0xf]
    %v561 = vld [vmem:[%s17 + $0x8] sm:$0xf]
    %v562 = vld [vmem:[%s17 + $0xc] sm:$0xf]
    %v563 = vld [vmem:[%s17 + $0x10] sm:$0xf]
    %v564 = vld [vmem:[%s17 + $0x14] sm:$0xf]
    %v565 = vld [vmem:[%s17 + $0x18] sm:$0xf]
    %v566 = vld [vmem:[%s17 + $0x1c] sm:$0xf]
    %v567 = vld [vmem:[%s17 + $0x20] sm:$0xf]
    %v568 = vld [vmem:[%s17 + $0x24] sm:$0xf]
    %v569 = vld [vmem:[%s17 + $0x28] sm:$0xf]
    %v570 = vld [vmem:[%s17 + $0x2c] sm:$0xf]
    %v571 = vld [vmem:[%s17 + $0x30] sm:$0xf]
    %v572 = vld [vmem:[%s17 + $0x34] sm:$0xf]
    %v573 = vld [vmem:[%s17 + $0x38] sm:$0xf]
    %v574 = vld [vmem:[%s17 + $0x3c] sm:$0xf]
    %v575 = vld [vmem:[%s18] sm:$0x1]
    %v577 = vperm.slane %v575, 0
    %v595 = vunpack.c.l.b16 %v559
    %v596 = vunpack.c.l.b16 %v560
    %v597 = vunpack.c.l.b16 %v561
    %v598 = vunpack.c.l.b16 %v562
    %v599 = vunpack.c.l.b16 %v563
    %v600 = vunpack.c.l.b16 %v564
    %v601 = vunpack.c.l.b16 %v565
    %v602 = vunpack.c.l.b16 %v566
    %v603 = vunpack.c.l.b16 %v567
    %v604 = vunpack.c.l.b16 %v568
    %v605 = vunpack.c.l.b16 %v569
    %v606 = vunpack.c.l.b16 %v570
    %v607 = vunpack.c.l.b16 %v571
    %v608 = vunpack.c.l.b16 %v572
    %v609 = vunpack.c.l.b16 %v573
    %v610 = vunpack.c.l.b16 %v574
    %v611 = vpack.c.b16 %v596, %v595
    %v612 = vpack.c.b16 %v598, %v597
    %v613 = vpack.c.b16 %v600, %v599
    %v614 = vpack.c.b16 %v602, %v601
    %v615 = vpack.c.b16 %v604, %v603
    %v616 = vpack.c.b16 %v606, %v605
    %v617 = vpack.c.b16 %v608, %v607
    %v618 = vpack.c.b16 %v610, %v609
    %627 = vmatpush.bf16.msra.mxu0 %v618
    %628 = vmatpush.bf16.msra.mxu0 %v617
    %629 = vmatpush.bf16.msra.mxu0 %v616
    %630 = vmatpush.bf16.msra.mxu0 %v615
    %631 = vmatpush.bf16.msra.mxu0 %v614
    %632 = vmatpush.bf16.msra.mxu0 %v613
    %633 = vmatpush.bf16.msra.mxu0 %v612
    %634 = vmatpush.bf16.msra.mxu0 %v611
    %635 = vmatmul.bf16.gmra.mxu0 %v558
    %v636 = vpop.f32.mrf.mxu0
    %v637 = vadd.f32 %v577, %v636
    %v638 = vpop.f32.mrf.mxu0
    %639 = vdwg.mxu0
    %v640 = vld [vmem:[%s19] sm:$0x1]
    %v641 = vld [vmem:[%s20] sm:$0x1]
    %642 = vadd.xlane.f32.xlu0 %v637
    %v643 = vpop.xlane.xlu0 %642
    %v644 = vmul.f32 %v643, %v528
    %v645 = vsub.f32 %v637, %v644
    %v646 = vmul.f32 %v645, %v645
    %647 = vadd.xlane.f32.xlu0 %v646
    %v648 = vpop.xlane.xlu0 %647
    %v649 = vmul.f32 %v648, %v528
    %v650 = vadd.f32 %v649, 1e-05
    %v651 = vrsqrt.pop %v650
    %v652 = vmul.f32 %v651, %v650
    %v653 = vmul.f32 %v652, %v651
    %v654 = vmul.f32 0.5, %v653
    %v655 = vsub.f32 1.5, %v654
    %v656 = vmul.f32 %v651, %v655
    %vm657 = vweird.f32 %v650
    %vm658 = vweird.f32 %v651
    %vm659 = vmor %vm657, %vm658
    %v660 = vsel %vm659, %v651, %v656
    %v661 = vmul.f32 %v645, %v660
    %v663 = vperm.slane %v640, 0
    %v665 = vmul.f32 %v661, %v663
    %v667 = vperm.slane %v641, 0
    %v669 = vadd.f32 %v665, %v667
    %vm670 = vcmp.gt.f32.partialorder %v669, 0.0
    %v671 = vmul.f32 %v669, 0.2
    %v672 = vsel %vm670, %v669, %v671
    %v673 = vpack.c.bf16 %v672, %v672
    %v674 = vld [vmem:[%s21] sm:$0xf]
    %v675 = vld [vmem:[%s21 + $0x4] sm:$0xf]
    %v676 = vld [vmem:[%s21 + $0x8] sm:$0xf]
    %v677 = vld [vmem:[%s21 + $0xc] sm:$0xf]
    %v678 = vld [vmem:[%s21 + $0x10] sm:$0xf]
    %v679 = vld [vmem:[%s21 + $0x14] sm:$0xf]
    %v680 = vld [vmem:[%s21 + $0x18] sm:$0xf]
    %v681 = vld [vmem:[%s21 + $0x1c] sm:$0xf]
    %v682 = vld [vmem:[%s21 + $0x20] sm:$0xf]
    %v683 = vld [vmem:[%s21 + $0x24] sm:$0xf]
    %v684 = vld [vmem:[%s21 + $0x28] sm:$0xf]
    %v685 = vld [vmem:[%s21 + $0x2c] sm:$0xf]
    %v686 = vld [vmem:[%s21 + $0x30] sm:$0xf]
    %v687 = vld [vmem:[%s21 + $0x34] sm:$0xf]
    %v688 = vld [vmem:[%s21 + $0x38] sm:$0xf]
    %v689 = vld [vmem:[%s21 + $0x3c] sm:$0xf]
    %v690 = vld [vmem:[%s22] sm:$0x1]
    %v692 = vperm.slane %v690, 0
    %v710 = vunpack.c.l.b16 %v674
    %v711 = vunpack.c.l.b16 %v675
    %v712 = vunpack.c.l.b16 %v676
    %v713 = vunpack.c.l.b16 %v677
    %v714 = vunpack.c.l.b16 %v678
    %v715 = vunpack.c.l.b16 %v679
    %v716 = vunpack.c.l.b16 %v680
    %v717 = vunpack.c.l.b16 %v681
    %v718 = vunpack.c.l.b16 %v682
    %v719 = vunpack.c.l.b16 %v683
    %v720 = vunpack.c.l.b16 %v684
    %v721 = vunpack.c.l.b16 %v685
    %v722 = vunpack.c.l.b16 %v686
    %v723 = vunpack.c.l.b16 %v687
    %v724 = vunpack.c.l.b16 %v688
    %v725 = vunpack.c.l.b16 %v689
    %v726 = vpack.c.b16 %v711, %v710
    %v727 = vpack.c.b16 %v713, %v712
    %v728 = vpack.c.b16 %v715, %v714
    %v729 = vpack.c.b16 %v717, %v716
    %v730 = vpack.c.b16 %v719, %v718
    %v731 = vpack.c.b16 %v721, %v720
    %v732 = vpack.c.b16 %v723, %v722
    %v733 = vpack.c.b16 %v725, %v724
    %742 = vmatpush.bf16.msra.mxu0 %v733
    %743 = vmatpush.bf16.msra.mxu0 %v732
    %744 = vmatpush.bf16.msra.mxu0 %v731
    %745 = vmatpush.bf16.msra.mxu0 %v730
    %746 = vmatpush.bf16.msra.mxu0 %v729
    %747 = vmatpush.bf16.msra.mxu0 %v728
    %748 = vmatpush.bf16.msra.mxu0 %v727
    %749 = vmatpush.bf16.msra.mxu0 %v726
    %750 = vmatmul.bf16.gmra.mxu0 %v673
    %v751 = vpop.f32.mrf.mxu0
    %v752 = vadd.f32 %v692, %v751
    %v753 = vpop.f32.mrf.mxu0
    %754 = vdwg.mxu0
    %v755 = vld [vmem:[%s23] sm:$0x1]
    %v756 = vld [vmem:[%s24] sm:$0x1]
    %757 = vadd.xlane.f32.xlu0 %v752
    %v758 = vpop.xlane.xlu0 %757
    %v759 = vmul.f32 %v758, %v528
    %v760 = vsub.f32 %v752, %v759
    %v761 = vmul.f32 %v760, %v760
    %762 = vadd.xlane.f32.xlu0 %v761
    %v763 = vpop.xlane.xlu0 %762
    %v764 = vmul.f32 %v763, %v528
    %v765 = vadd.f32 %v764, 1e-05
    %v766 = vrsqrt.pop %v765
    %v767 = vmul.f32 %v766, %v765
    %v768 = vmul.f32 %v767, %v766
    %v769 = vmul.f32 0.5, %v768
    %v770 = vsub.f32 1.5, %v769
    %v771 = vmul.f32 %v766, %v770
    %vm772 = vweird.f32 %v765
    %vm773 = vweird.f32 %v766
    %vm774 = vmor %vm772, %vm773
    %v775 = vsel %vm774, %v766, %v771
    %v776 = vmul.f32 %v760, %v775
    %v778 = vperm.slane %v755, 0
    %v780 = vmul.f32 %v776, %v778
    %v782 = vperm.slane %v756, 0
    %v784 = vadd.f32 %v780, %v782
    %v785 = vadd.f32 %v784, %v557
    %vm786 = vcmp.gt.f32.partialorder %v785, 0.0
    %v787 = vmul.f32 %v785, 0.2
    %v788 = vsel %vm786, %v785, %v787
    %789 = vst [vmem:[#allocation2] sm:$0xff] %v788
    // Predicated region
    $region102: #{feature_extractor.1} parent=1 // pred_check
      _
    $region103: #{feature_extractor.1} parent=1 // pred_check_branch
      %791 = sbr.rel (0) target = $region105
    $region104: #{feature_extractor.1} parent=1 // pred_region
      %793 = vsyncadd [#allocation3], 0
      %s795 = sshll.u32 [#allocation2], 4
      %s796 = int_to_ptr.vmem [resolvable:$true] %s795
      %s797 = sshll.u32 %s25, 4
      %s798 = int_to_ptr.hbm [resolvable:$true] %s797
      %800 = dma.vmem_to_hbm [thread:$0]  %s796, 128, %s798, [#allocation3]
    $region105: #{feature_extractor.1} parent=1 // pred_fallthru
      _
    // Predicated region
    $region106: #{feature_extractor.1} parent=1 // pred_check
      _
    $region107: #{feature_extractor.1} parent=1 // pred_check_branch
      %802 = sbr.rel (0) target = $region109
    $region108: #{feature_extractor.1} parent=1 // pred_region
      %804 = dma.done [#allocation3], 128
    $region109: #{feature_extractor.1} parent=1 // pred_fallthru
      _
    %805 = vsyncpa [#allocation3], 1

</llo_original>
